<compile_context>
chip_gen: v7x
topology: tpu7x:2x2x1
jax: 0.10.0
libtpu: 0.0.40
codegen_flags: <defaults>
</compile_context>

<pallas_src>
import math

import jax
import jax.numpy as jnp
import numpy as np
from jax import lax
from jax.experimental import pallas as pl
from jax.experimental.pallas import tpu as pltpu


def _gaussian_taps_1d(kernel_size: int, sigma: float):
    """Normalized 1D gaussian as Python floats; outer(w1, w1) == the module's 2D kernel."""
    mean = (kernel_size - 1) / 2.0
    g = [
        math.exp(-(((i - mean) / sigma) ** 2) / 2.0) / (sigma * math.sqrt(2.0 * math.pi))
        for i in range(kernel_size)
    ]
    s = sum(g)
    return [v / s for v in g]


def make_gaussian_weight_2d(channels: int, kernel_size: int, sigma: float) -> jnp.ndarray:
    """Replicates GaussianSmoothing.__init__ weight construction (dim=2), for the reference."""
    ks = [kernel_size] * 2
    sig = [sigma] * 2
    coords = [jnp.arange(s, dtype=jnp.float32) for s in ks]
    mg = jnp.meshgrid(*coords, indexing="ij")  # torch.meshgrid default is 'ij'
    kernel = jnp.ones((), jnp.float32)
    for size, std, grid in zip(ks, sig, mg):
        mean = (size - 1) / 2.0
        kernel = kernel * (1.0 / (std * math.sqrt(2 * math.pi))) * jnp.exp(
            -(((grid - mean) / std) ** 2) / 2.0
        )
    kernel = kernel / jnp.sum(kernel)
    return jnp.broadcast_to(kernel[None, :, :], (channels, kernel_size, kernel_size))


def _round_up(a: int, b: int) -> int:
    return ((a + b - 1) // b) * b


def gaussian_smoothing_2d(x: jnp.ndarray, kernel_size: int, sigma: float) -> jnp.ndarray:
    """Depthwise gaussian smoothing (valid padding) via a separable Pallas TPU kernel.

    x: (N, C, H, W); returns (N, C, H-K+1, W-K+1) in x.dtype.
    """
    N, C, H, W = x.shape
    K = int(kernel_size)
    Ho, Wo = H - K + 1, W - K + 1
    assert Ho >= 1 and Wo >= 1, "kernel larger than input"

    taps = _gaussian_taps_1d(K, sigma)

    # Banded-Toeplitz matrix for the row (W) pass: tmp[., wo] = sum_w x[., w] * band[w, wo].
    band_np = np.zeros((W, Wo), np.float32)
    for j, t in enumerate(taps):
        for wo in range(Wo):
            band_np[wo + j, wo] = t
    band_dtype = jnp.bfloat16 if x.dtype == jnp.bfloat16 else jnp.float32
    band = jnp.asarray(band_np, dtype=band_dtype)
    # fp32 contract precision on the MXU for f32 inputs; bf16 inputs are MXU-native.
    mm_precision = jax.lax.Precision.HIGHEST if band_dtype == jnp.float32 else None

    NC = N * C
    x_flat = x.reshape(NC, H, W)

    # ---- Generation-aware VMEM budget (v7x: 64 MiB/TC; v5e/v6e: 128 MiB). ----
    try:
        vmem_cap = int(pltpu.get_tpu_info().vmem_capacity_bytes)
    except Exception:
        vmem_cap = 64 * 1024 * 1024  # conservative (v7x-sized) fallback
    budget = max(8 << 20, vmem_cap // 4)

    itemsize = jnp.dtype(x.dtype).itemsize
    h_p, w_p = _round_up(H, 8), _round_up(W, 128)
    ho_p, wo_p = _round_up(Ho, 8), _round_up(Wo, 128)
    # Per fused image: double-buffered in + out, single-buffered f32 row-pass scratch.
    bytes_per_img = (2 * itemsize * h_p * w_p
                     + 2 * itemsize * ho_p * wo_p
                     + 4 * h_p * wo_p)

    cap = max(1, budget // bytes_per_img)
    steps = pl.cdiv(NC, min(cap, NC))
    if NC >= 2:
        steps = max(steps, 2)            # >= 2 steps so v7x can use both TensorCores
        if steps % 2 and steps < NC:     # prefer an even step count for 2-TC balance
            steps += 1
        steps = min(steps, NC)
    bc = pl.cdiv(NC, steps)
    grid = (pl.cdiv(NC, bc),)            # ragged last block handled by Pallas masking

    vmem_limit = int(min(max(32 << 20, 3 * bc * bytes_per_img + (4 << 20)),
                         max(32 << 20, vmem_cap - (8 << 20))))

    # Column-pass strip height: keep the live f32 strip accumulator well inside the
    # 256 KiB vreg file (avoid a spill-bound unrolled tap chain).
    rows_budget = (96 * 1024) // max(1, bc * wo_p * 4)
    hs = min(Ho, max(8, (rows_budget // 8) * 8))

    def kernel(band_ref, x_ref, o_ref, tmp_ref):
        # Row (W) pass on the MXU: banded-Toeplitz matmul with f32 accumulation.
        xb = x_ref[...].reshape(bc * H, W)
        res = jnp.dot(xb, band_ref[...],
                      preferred_element_type=jnp.float32,
                      precision=mm_precision)
        tmp_ref[...] = res.reshape(bc, H, Wo)
        # Column (H) pass: compile-time-constant taps, sublane-offset slices,
        # accumulated per output-row strip to bound vreg pressure.
        for s0 in range(0, Ho, hs):
            rows_s = min(hs, Ho - s0)
            acc = taps[0] * tmp_ref[:, pl.ds(s0, rows_s), :]
            for i in range(1, K):
                acc = acc + taps[i] * tmp_ref[:, pl.ds(s0 + i, rows_s), :]
            o_ref[:, pl.ds(s0, rows_s), :] = acc.astype(o_ref.dtype)

    out_flat = pl.pallas_call(
        kernel,
        out_shape=jax.ShapeDtypeStruct((NC, Ho, Wo), x.dtype),
        grid=grid,
        in_specs=[
            pl.BlockSpec((W, Wo), lambda i: (0, 0)),         # shared band matrix (VMEM)
            pl.BlockSpec((bc, H, W), lambda i: (i, 0, 0)),   # bc fused images per step
        ],
        out_specs=pl.BlockSpec((bc, Ho, Wo), lambda i: (i, 0, 0)),
        scratch_shapes=[pltpu.VMEM((bc, H, Wo), jnp.float32)],  # row-pass intermediate
        compiler_params=pltpu.CompilerParams(
            dimension_semantics=("parallel",),
            vmem_limit_bytes=vmem_limit,
        ),
    )(band, x_flat)

    return out_flat.reshape(N, C, Ho, Wo)


def reference_depthwise_conv(x: jnp.ndarray, weight: jnp.ndarray) -> jnp.ndarray:
    """Pure-JAX reference: F.conv2d(x, weight[:, None], groups=C)."""
    C = x.shape[1]
    w = weight[:, None, :, :]  # (C, 1, K, K) == OIHW with feature groups
    return lax.conv_general_dilated(
        x, w,
        window_strides=(1, 1),
        padding="VALID",
        dimension_numbers=("NCHW", "OIHW", "NCHW"),
        feature_group_count=C,
        precision=lax.Precision.HIGHEST,
    )


if __name__ == "__main__":
    channels = 4
    kernel_size = 5
    sigma = 2.0

    key = jax.random.PRNGKey(0)
    x = jax.random.normal(key, (2, channels, 16, 16), dtype=jnp.float32)

    out = gaussian_smoothing_2d(x, kernel_size, sigma)
    out = jax.block_until_ready(out)

    w2d = make_gaussian_weight_2d(channels, kernel_size, sigma)
    ref = reference_depthwise_conv(x, w2d)

    assert out.shape == (2, channels, 12, 12), out.shape
    # Separable row/column decomposition + MXU fp32 contract: tight agreement expected.
    assert jnp.allclose(out, ref, atol=1e-4, rtol=1e-4), "mismatch vs reference conv"

    print("KERNEL_OK")
</pallas_src>

<mosaic_0001>
module attributes {stable_mosaic.version = 11 : i64} {
  func.func @kernel(%arg0: i32, %arg1: memref<16x12xf32, #tpu.memory_space<vmem>>, %arg2: memref<4x16x16xf32, #tpu.memory_space<vmem>>, %arg3: memref<4x12x12xf32, #tpu.memory_space<vmem>>, %arg4: memref<4x16x12xf32, #tpu.memory_space<vmem>>) attributes {dimension_semantics = [#tpu.dimension_semantics<parallel>], iteration_bounds = array<i64: 2>, scalar_prefetch = 0 : i64, scratch_operands = 1 : i64, tpu.core_type = #tpu.core_type<tc>, window_params = [{pipeline_mode = #tpu.pipeline_mode<synchronous>, transform_indices = @transform_0, window_bounds = array<i64: 16, 12>}, {transform_indices = @transform_1, window_bounds = array<i64: 4, 16, 16>}, {transform_indices = @transform_2, window_bounds = array<i64: 4, 12, 12>}]} {
    %c0 = arith.constant 0 : index
    %c0_0 = arith.constant 0 : index
    %c0_1 = arith.constant 0 : index
    %0 = vector.load %arg2[%c0, %c0_0, %c0_1] : memref<4x16x16xf32, #tpu.memory_space<vmem>>, vector<4x16x16xf32>
    %1 = vector.shape_cast %0 : vector<4x16x16xf32> to vector<64x16xf32>
    %c0_2 = arith.constant 0 : index
    %c0_3 = arith.constant 0 : index
    %2 = vector.load %arg1[%c0_2, %c0_3] : memref<16x12xf32, #tpu.memory_space<vmem>>, vector<16x12xf32>
    %cst = arith.constant dense<0.000000e+00> : vector<64x12xf32>
    %3 = tpu.matmul %1, %2, %cst {dimension_numbers = #tpu.dot_dimension_numbers<[1], [0], [0], [1], [0, 0, 1, 1], [], []>, precision = #tpu.contract_precision<fp32>} : vector<64x16xf32>, vector<16x12xf32>, vector<64x12xf32> -> vector<64x12xf32>
    %4 = vector.shape_cast %3 : vector<64x12xf32> to vector<4x16x12xf32>
    %c0_4 = arith.constant 0 : index
    %c0_5 = arith.constant 0 : index
    %c0_6 = arith.constant 0 : index
    %5 = vector.load %arg4[%c0_4, %c0_5, %c0_6] : memref<4x16x12xf32, #tpu.memory_space<vmem>>, vector<4x16x12xf32>
    tpu.vector_store %arg4[%c0_4, %c0_5, %c0_6], %4 {strides = array<i32>} : memref<4x16x12xf32, #tpu.memory_space<vmem>>, vector<4x16x12xf32>,
    %c0_7 = arith.constant 0 : index
    %c0_8 = arith.constant 0 : index
    %c0_9 = arith.constant 0 : index
    %6 = vector.load %arg4[%c0_7, %c0_8, %c0_9] : memref<4x16x12xf32, #tpu.memory_space<vmem>>, vector<4x12x12xf32>
    %cst_10 = arith.constant 0.152469143 : f32
    %7 = vector.broadcast %cst_10 : f32 to vector<4x12x12xf32>
    %8 = arith.mulf %7, %6 : vector<4x12x12xf32>
    %c0_11 = arith.constant 0 : index
    %c1 = arith.constant 1 : index
    %c0_12 = arith.constant 0 : index
    %9 = vector.load %arg4[%c0_11, %c1, %c0_12] : memref<4x16x12xf32, #tpu.memory_space<vmem>>, vector<4x12x12xf32>
    %cst_13 = arith.constant 0.221841291 : f32
    %10 = vector.broadcast %cst_13 : f32 to vector<4x12x12xf32>
    %11 = arith.mulf %10, %9 : vector<4x12x12xf32>
    %12 = arith.addf %8, %11 : vector<4x12x12xf32>
    %c0_14 = arith.constant 0 : index
    %c2 = arith.constant 2 : index
    %c0_15 = arith.constant 0 : index
    %13 = vector.load %arg4[%c0_14, %c2, %c0_15] : memref<4x16x12xf32, #tpu.memory_space<vmem>>, vector<4x12x12xf32>
    %cst_16 = arith.constant 0.251379132 : f32
    %14 = vector.broadcast %cst_16 : f32 to vector<4x12x12xf32>
    %15 = arith.mulf %14, %13 : vector<4x12x12xf32>
    %16 = arith.addf %12, %15 : vector<4x12x12xf32>
    %c0_17 = arith.constant 0 : index
    %c3 = arith.constant 3 : index
    %c0_18 = arith.constant 0 : index
    %17 = vector.load %arg4[%c0_17, %c3, %c0_18] : memref<4x16x12xf32, #tpu.memory_space<vmem>>, vector<4x12x12xf32>
    %cst_19 = arith.constant 0.221841291 : f32
    %18 = vector.broadcast %cst_19 : f32 to vector<4x12x12xf32>
    %19 = arith.mulf %18, %17 : vector<4x12x12xf32>
    %20 = arith.addf %16, %19 : vector<4x12x12xf32>
    %c0_20 = arith.constant 0 : index
    %c4 = arith.constant 4 : index
    %c0_21 = arith.constant 0 : index
    %21 = vector.load %arg4[%c0_20, %c4, %c0_21] : memref<4x16x12xf32, #tpu.memory_space<vmem>>, vector<4x12x12xf32>
    %cst_22 = arith.constant 0.152469143 : f32
    %22 = vector.broadcast %cst_22 : f32 to vector<4x12x12xf32>
    %23 = arith.mulf %22, %21 : vector<4x12x12xf32>
    %24 = arith.addf %20, %23 : vector<4x12x12xf32>
    %c0_23 = arith.constant 0 : index
    %c0_24 = arith.constant 0 : index
    %c0_25 = arith.constant 0 : index
    %25 = vector.load %arg3[%c0_23, %c0_24, %c0_25] : memref<4x12x12xf32, #tpu.memory_space<vmem>>, vector<4x12x12xf32>
    tpu.vector_store %arg3[%c0_23, %c0_24, %c0_25], %24 {strides = array<i32>} : memref<4x12x12xf32, #tpu.memory_space<vmem>>, vector<4x12x12xf32>,
    return
  }
  func.func @transform_0(%arg0: i32) -> (i32, i32) {
    %c0_i32 = arith.constant 0 : i32
    %c0_i32_0 = arith.constant 0 : i32
    %c0_i32_1 = arith.constant 0 : i32
    return %c0_i32, %c0_i32_0 : i32, i32
  }
  func.func @transform_1(%arg0: i32) -> (i32, i32, i32) {
    %c0_i32 = arith.constant 0 : i32
    %c0_i32_0 = arith.constant 0 : i32
    %c0_i32_1 = arith.constant 0 : i32
    return %arg0, %c0_i32, %c0_i32_0 : i32, i32, i32
  }
  func.func @transform_2(%arg0: i32) -> (i32, i32, i32) {
    %c0_i32 = arith.constant 0 : i32
    %c0_i32_0 = arith.constant 0 : i32
    %c0_i32_1 = arith.constant 0 : i32
    return %arg0, %c0_i32, %c0_i32_0 : i32, i32, i32
  }
}

</mosaic_0001>

<llo_original>
// kernel: tpu_custom_call.1
$region0: #{tpu_custom_call.1}
  #allocation0 [shape = 'u32[]', space=smem, size = 0x4, offset = 0x4, fixed_abs, tag = 'smem constant byte address 0x4 - core index']
  #allocation1 [shape = 'u32[144,128]{1,0:T(1,128)}', space=vmem, size = 0x12000, scoped, tag = 'internal scratch']
  #allocation2 [shape = 'f32[4,16,12]{2,1,0:T(8,128)}', space=vmem, size = 0x8000, scoped, tag = 'scratch operand']
  %s0 = inlined_call_operand.hbm [shape: f32[16,12], index: 0, kind: input, shape index: {}]
  %s1 = inlined_call_operand.hbm [shape: f32[8,16,16], index: 1, kind: input, shape index: {}]
  %s2 = inlined_call_operand.vmem [shape: f32[8,12,12], index: 2, kind: output, shape index: {}]
  %s3 = sld [smem:[#allocation0]]
  $region49: #{tpu_custom_call.1} parent=0
    _
  %s5 = ssub.s32 1, %s3
  %s6 = scalar_select 0, %s5, %s3
  $region1: #{tpu_custom_call.1} parent=0
    #allocation3 [shape = 'u8[8192]{0}', space=vmem, size = 0x2000, scoped, tag = 'input window, operand 0, single buffered']
    #allocation4 [shape = 's32[2]{0}', space=sflag, size = 0x8, scoped, tag = 'scoped memory for tpu_custom_call.1']
    #allocation5 [shape = 'u8[65536]{0}', space=vmem, size = 0x10000, scoped, tag = 'input window, operand 1']
    #allocation6 [shape = 's32[2]{0}', space=sflag, size = 0x8, scoped, tag = 'scoped memory for tpu_custom_call.1']
    %7 = vsyncpa [#allocation4], 0
    %8 = vsyncpa [#allocation6], 0
    %s9 = scalar_lea.sflag [#allocation6], 1
    %10 = vsyncpa %s9, 0
    loop: start=0, step=1, limit=4
    $region2: #{tpu_custom_call.1} parent=1 // loop_pre_header
      _
    $region3: #{tpu_custom_call.1} parent=1 // loop_header
      %s12 = sphi 0, %s16
      %p13 = scmp.ge.s32.totalorder %s12, 4
      %s20 = sphi 0, %s20
      %s22 = sphi 0, %s20
      %s23 = sphi 0, %s22
      %s37 = sphi 0, %s23
      %s43 = sphi 0, %s45
      %s46 = sphi 0, %s43
      %s47 = sphi 0, %s46
      %s63 = sphi 0, %s47
      %s69 = sphi 0, %s71
      %s72 = sphi 0, %s69
      %s73 = sphi 0, %s72
      %s89 = sphi 0, %s73
    $region4: #{tpu_custom_call.1} parent=1 // loop_header_branch
      %15 = sbr.rel (%p13) target = $region8
    $region5: #{tpu_custom_call.1} parent=1 // loop_body
      %s17 = ssub.s32 %s12, 1
      %s18 = ssub.s32 %s12, 2
      %s19 = sadd.s32 %s12, 1
      %s21 = sadd.s32 %s20, 1
      %p24 = scmp.eq.s32.totalorder %s12, 1
      %p25 = scmp.ne.s32.totalorder %s20, %s22
      %p26 = scmp.eq.s32.totalorder %s12, 0
      %p27 = por %p25, %p26
      %p28 = scmp.ne.s32.totalorder %s20, %s22
      %p29 = scmp.eq.s32.totalorder %s17, 1
      %p30 = por %p28, %p29
      %p31 = scmp.ne.s32.totalorder %s22, %s23
      %p32 = scmp.eq.s32.totalorder %s17, 0
      %p33 = por %p31, %p32
      %p34 = scmp.ne.s32.totalorder %s22, %s23
      %p35 = scmp.eq.s32.totalorder %s18, 1
      %p36 = por %p34, %p35
      %p38 = scmp.ne.s32.totalorder %s23, %s37
      %p39 = scmp.eq.s32.totalorder %s18, 0
      %p40 = por %p38, %p39
      %s41 = ssub.s32 %s12, %s19
      %p42 = scmp.eq.s32.totalorder %s41, 0
      %s44 = sadd.s32 %s43, 1
      %s45 = scalar_select %p42, %s43, %s44
      %p48 = pneg %p42
      %p49 = scmp.eq.s32.totalorder %s12, 1
      %p50 = por %p48, %p49
      %p51 = scmp.ne.s32.totalorder %s43, %s46
      %p52 = scmp.eq.s32.totalorder %s12, 0
      %p53 = por %p51, %p52
      %p54 = scmp.ne.s32.totalorder %s43, %s46
      %p55 = scmp.eq.s32.totalorder %s17, 1
      %p56 = por %p54, %p55
      %p57 = scmp.ne.s32.totalorder %s46, %s47
      %p58 = scmp.eq.s32.totalorder %s17, 0
      %p59 = por %p57, %p58
      %p60 = scmp.ne.s32.totalorder %s46, %s47
      %p61 = scmp.eq.s32.totalorder %s18, 1
      %p62 = por %p60, %p61
      %p64 = scmp.ne.s32.totalorder %s47, %s63
      %p65 = scmp.eq.s32.totalorder %s18, 0
      %p66 = por %p64, %p65
      %s67 = ssub.s32 %s12, %s19
      %p68 = scmp.eq.s32.totalorder %s67, 0
      %s70 = sadd.s32 %s69, 1
      %s71 = scalar_select %p68, %s69, %s70
      %p74 = pneg %p68
      %p75 = scmp.eq.s32.totalorder %s12, 1
      %p76 = por %p74, %p75
      %p77 = scmp.ne.s32.totalorder %s69, %s72
      %p78 = scmp.eq.s32.totalorder %s12, 0
      %p79 = por %p77, %p78
      %p80 = scmp.ne.s32.totalorder %s69, %s72
      %p81 = scmp.eq.s32.totalorder %s17, 1
      %p82 = por %p80, %p81
      %p83 = scmp.ne.s32.totalorder %s72, %s73
      %p84 = scmp.eq.s32.totalorder %s17, 0
      %p85 = por %p83, %p84
      %p86 = scmp.ne.s32.totalorder %s72, %s73
      %p87 = scmp.eq.s32.totalorder %s18, 1
      %p88 = por %p86, %p87
      %p90 = scmp.ne.s32.totalorder %s73, %s89
      %p91 = scmp.eq.s32.totalorder %s18, 0
      %p92 = por %p90, %p91
      %p93 = scmp.le.s32.totalorder 1, %s12
      %p94 = scmp.lt.s32.totalorder %s12, 3
      %p95 = pnand %p93, %p94
      %p96 = pneg %p95
      // Predicated region
      $region9: #{tpu_custom_call.1} parent=5 // pred_check
        _
      $region10: #{tpu_custom_call.1} parent=5 // pred_check_branch
        %98 = sbr.rel (%p95) target = $region12
      $region11: #{tpu_custom_call.1} parent=5 // pred_region
        %s99 = ssub.s32 %s12, 1
        // Predicated region
        $region13: #{tpu_custom_call.1} parent=11 // pred_check
          %p100 = pneg %p33
        $region14: #{tpu_custom_call.1} parent=11 // pred_check_branch
          %102 = sbr.rel (%p100) target = $region16
        $region15: #{tpu_custom_call.1} parent=11 // pred_region
          %s104 = ssub.s32 256, 256
          %105 = vsyncadd [#allocation4], %s104
          %s106 = sshll.u32 [#allocation3], 4
          %s107 = int_to_ptr.vmem [resolvable:$true] %s106
          %112 = dma.hbm_to_vmem [thread:$0]  %s0, 256, %s107, [#allocation4], 128, 128, 8
        $region16: #{tpu_custom_call.1} parent=11 // pred_fallthru
          _
      $region12: #{tpu_custom_call.1} parent=5 // pred_fallthru
        _
      %p113 = scmp.lt.s32.totalorder %s12, 2
      // Predicated region
      $region17: #{tpu_custom_call.1} parent=5 // pred_check
        %p114 = pneg %p113
      $region18: #{tpu_custom_call.1} parent=5 // pred_check_branch
        %116 = sbr.rel (%p114) target = $region20
      $region19: #{tpu_custom_call.1} parent=5 // pred_region
        // Predicated region
        $region21: #{tpu_custom_call.1} parent=19 // pred_check
          %p117 = pneg %p53
        $region22: #{tpu_custom_call.1} parent=19 // pred_check_branch
          %119 = sbr.rel (%p117) target = $region24
        $region23: #{tpu_custom_call.1} parent=19 // pred_region
          %s120 = sand.u32 %s43, 1
          %s121 = scalar_lea.sflag [#allocation6], %s120
          %s122 = sand.u32 %s43, 1
          %s123 = smul.addr %s122, 64
          %s124 = scalar_lea.vmem [#allocation5], %s123
          %s125 = smul.u32 4, %s12
          %s127 = ssub.s32 1024, 1024
          %128 = vsyncadd %s121, %s127
          %s129 = smul.addr %s125, 2
          %s130 = smul.addr %s129, 128
          %s131 = scalar_lea.hbm %s1, %s130
          %s132 = sshll.u32 %s124, 4
          %s133 = int_to_ptr.vmem [resolvable:$true] %s132
          %138 = dma.hbm_to_vmem [thread:$0]  %s131, 1024, %s133, %s121, 128, 128, 8
        $region24: #{tpu_custom_call.1} parent=19 // pred_fallthru
          _
      $region20: #{tpu_custom_call.1} parent=5 // pred_fallthru
        _
      %p139 = scmp.le.s32.totalorder 1, %s12
      %p140 = scmp.lt.s32.totalorder %s12, 3
      %p141 = pnand %p139, %p140
      %p142 = pneg %p141
      // Predicated region
      $region25: #{tpu_custom_call.1} parent=5 // pred_check
        _
      $region26: #{tpu_custom_call.1} parent=5 // pred_check_branch
        %144 = sbr.rel (%p141) target = $region28
      $region27: #{tpu_custom_call.1} parent=5 // pred_region
        %s145 = ssub.s32 %s12, 1
        // Predicated region
        $region29: #{tpu_custom_call.1} parent=27 // pred_check
          %p146 = pneg %p33
        $region30: #{tpu_custom_call.1} parent=27 // pred_check_branch
          %148 = sbr.rel (%p146) target = $region32
        $region31: #{tpu_custom_call.1} parent=27 // pred_region
          %149 = dma.done [#allocation4], 256
        $region32: #{tpu_custom_call.1} parent=27 // pred_fallthru
          _
        %s150 = sand.u32 %s46, 1
        %s151 = scalar_lea.sflag [#allocation6], %s150
        %s152 = sand.u32 %s46, 1
        %s153 = smul.addr %s152, 64
        %s154 = scalar_lea.vmem [#allocation5], %s153
        // Predicated region
        $region33: #{tpu_custom_call.1} parent=27 // pred_check
          %p155 = pneg %p59
        $region34: #{tpu_custom_call.1} parent=27 // pred_check_branch
          %157 = sbr.rel (%p155) target = $region36
        $region35: #{tpu_custom_call.1} parent=27 // pred_region
          %158 = dma.done %s151, 1024
        $region36: #{tpu_custom_call.1} parent=27 // pred_fallthru
          _
        %p159 = pneg %p33
        %p160 = pneg %p30
        %s161 = sand.u32 %s46, 1
        %s162 = scalar_lea.sflag [#allocation6], %s161
        %s163 = sand.u32 %s46, 1
        %s164 = smul.addr %s163, 64
        %s165 = scalar_lea.vmem [#allocation5], %s164
        %p166 = pneg %p59
        %p167 = pneg %p56
        %p168 = pneg %p85
        %p169 = pneg %p82
        %s170 = smul.u32 4, %s17
        %p171 = scmp.lt.s32.totalorder %s170, 7
        %s172 = scalar_select %p171, %s170, 7
        %s173 = smul.addr %s172, 2
        %s174 = smul.addr %s173, 8
        %s175 = scalar_lea.vmem %s2, %s174
        %s176 = smul.u32 4, %s17
        %s177 = smul.u32 4, %s17
        %p178 = scmp.lt.s32.totalorder %s177, 7
        %s179 = scalar_select %p178, %s177, 7
        %s180 = smul.addr %s179, 2
        %s181 = smul.addr %s180, 8
        %s182 = scalar_lea.vmem %s2, %s181
        %s183 = smul.u32 4, %s17
        %v184 = vld [vmem:[%s154] sm:$0xff]
        %v185 = vld [vmem:[%s154 + $0x8] sm:$0xff]
        %v186 = vld [vmem:[%s154 + $0x10] sm:$0xff]
        %v187 = vld [vmem:[%s154 + $0x18] sm:$0xff]
        %v188 = vld [vmem:[%s154 + $0x20] sm:$0xff]
        %v189 = vld [vmem:[%s154 + $0x28] sm:$0xff]
        %v190 = vld [vmem:[%s154 + $0x30] sm:$0xff]
        %v191 = vld [vmem:[%s154 + $0x38] sm:$0xff]
        %v192 = vld [vmem:[#allocation3] sm:$0xff]
        %v193 = vld [vmem:[#allocation3 + $0x8] sm:$0xff]
        %vm194 = vcmask 130048
        %v196 = vsel %vm194, %v184, 0
        %v199 = vsel %vm194, %v185, 0
        %v202 = vsel %vm194, %v186, 0
        %v205 = vsel %vm194, %v187, 0
        %v208 = vsel %vm194, %v188, 0
        %v211 = vsel %vm194, %v189, 0
        %v214 = vsel %vm194, %v190, 0
        %v217 = vsel %vm194, %v191, 0
        %219 = vmatprep.subr.mxu0 0.0
        %v220 = vand.u32 %v192, 4294901760
        %221 = vmatpush1.msra.mxu0 %v220
        %222 = vmatprep.subr.mxu0 0.0
        %v223 = vand.u32 %v193, 4294901760
        %224 = vmatpush1.msra.mxu0 %v223
        %225 = vmatprep.subr.mxu0 0.0
        %226 = vmatpush1.msra.mxu0 0.0
        %227 = vmatprep.subr.mxu0 0.0
        %228 = vmatpush1.msra.mxu0 0.0
        %229 = vmatprep.subr.mxu0 0.0
        %230 = vmatpush1.msra.mxu0 0.0
        %231 = vmatprep.subr.mxu0 0.0
        %232 = vmatpush1.msra.mxu0 0.0
        %233 = vmatprep.subr.mxu0 0.0
        %234 = vmatpush1.msra.mxu0 0.0
        %235 = vmatprep.subr.mxu0 0.0
        %236 = vmatpush1.msra.mxu0 0.0
        %237 = vmatprep.subr.mxu0 0.0
        %238 = vmatpush1.msra.mxu0 0.0
        %239 = vmatprep.subr.mxu0 0.0
        %240 = vmatpush1.msra.mxu0 0.0
        %241 = vmatprep.subr.mxu0 0.0
        %242 = vmatpush1.msra.mxu0 0.0
        %243 = vmatprep.subr.mxu0 0.0
        %244 = vmatpush1.msra.mxu0 0.0
        %245 = vmatprep.subr.mxu0 0.0
        %246 = vmatpush1.msra.mxu0 0.0
        %247 = vmatprep.subr.mxu0 0.0
        %248 = vmatpush1.msra.mxu0 0.0
        %249 = vmatprep.subr.mxu0 0.0
        %250 = vmatpush1.msra.mxu0 0.0
        %251 = vmatprep.subr.mxu0 0.0
        %252 = vmatpush1.msra.mxu0 0.0
        %253 = vmatprep.subr.mxu0 0.0
        %254 = vmatpush1.msra.mxu0 0.0
        %255 = vmatprep.subr.mxu0 0.0
        %256 = vmatpush1.msra.mxu0 0.0
        %257 = vmatprep.subr.mxu0 0.0
        %258 = vmatpush1.msra.mxu0 0.0
        %259 = vmatprep.subr.mxu0 0.0
        %260 = vmatpush1.msra.mxu0 0.0
        %261 = vmatprep.subr.mxu0 0.0
        %262 = vmatpush1.msra.mxu0 0.0
        %263 = vmatprep.subr.mxu0 0.0
        %264 = vmatpush1.msra.mxu0 0.0
        %265 = vmatprep.subr.mxu0 0.0
        %266 = vmatpush1.msra.mxu0 0.0
        %267 = vmatprep.subr.mxu0 0.0
        %268 = vmatpush1.msra.mxu0 0.0
        %269 = vmatprep.subr.mxu0 0.0
        %270 = vmatpush1.msra.mxu0 0.0
        %271 = vmatprep.subr.mxu0 0.0
        %272 = vmatpush1.msra.mxu0 0.0
        %273 = vmatprep.subr.mxu0 0.0
        %274 = vmatpush1.msra.mxu0 0.0
        %275 = vmatprep.subr.mxu0 0.0
        %276 = vmatpush1.msra.mxu0 0.0
        %277 = vmatprep.subr.mxu0 0.0
        %278 = vmatpush1.msra.mxu0 0.0
        %279 = vmatprep.subr.mxu0 0.0
        %280 = vmatpush1.msra.mxu0 0.0
        %281 = vmatprep.subr.mxu0 0.0
        %282 = vmatpush1.msra.mxu0 0.0
        %283 = vmatprep.subr.mxu0 0.0
        %284 = vmatpush1.msra.mxu0 0.0
        %285 = vmatprep.mubr.f32.mxu0 0.0
        %v286 = vand.u32 %v196, 4294901760
        %v287 = vsub.f32 %v196, %v286
        %v288 = vand.u32 %v287, 4294901760
        %v289 = vsub.f32 %v287, %v288
        %v290 = vand.u32 %v289, 4294901760
        %291 = vmatmul.mubr.f32.gmra.mrb[0].mxu0 %v290
        %v292 = vpop.f32.mrb[0].mxu0
        %v293 = vadd.f32 0.0, %v292
        %v294 = vpop.f32.mrb[0].mxu0
        %295 = vmatprep.mubr.f32.mxu0 0.0
        %v296 = vand.u32 %v199, 4294901760
        %v297 = vsub.f32 %v199, %v296
        %v298 = vand.u32 %v297, 4294901760
        %v299 = vsub.f32 %v297, %v298
        %v300 = vand.u32 %v299, 4294901760
        %301 = vmatmul.mubr.f32.gmra.mrb[0].mxu0 %v300
        %v302 = vpop.f32.mrb[0].mxu0
        %v303 = vadd.f32 0.0, %v302
        %v304 = vpop.f32.mrb[0].mxu0
        %305 = vmatprep.mubr.f32.mxu0 0.0
        %v306 = vand.u32 %v202, 4294901760
        %v307 = vsub.f32 %v202, %v306
        %v308 = vand.u32 %v307, 4294901760
        %v309 = vsub.f32 %v307, %v308
        %v310 = vand.u32 %v309, 4294901760
        %311 = vmatmul.mubr.f32.gmra.mrb[0].mxu0 %v310
        %v312 = vpop.f32.mrb[0].mxu0
        %v313 = vadd.f32 0.0, %v312
        %v314 = vpop.f32.mrb[0].mxu0
        %315 = vmatprep.mubr.f32.mxu0 0.0
        %v316 = vand.u32 %v205, 4294901760
        %v317 = vsub.f32 %v205, %v316
        %v318 = vand.u32 %v317, 4294901760
        %v319 = vsub.f32 %v317, %v318
        %v320 = vand.u32 %v319, 4294901760
        %321 = vmatmul.mubr.f32.gmra.mrb[0].mxu0 %v320
        %v322 = vpop.f32.mrb[0].mxu0
        %v323 = vadd.f32 0.0, %v322
        %v324 = vpop.f32.mrb[0].mxu0
        %325 = vmatprep.mubr.f32.mxu0 0.0
        %v326 = vand.u32 %v208, 4294901760
        %v327 = vsub.f32 %v208, %v326
        %v328 = vand.u32 %v327, 4294901760
        %v329 = vsub.f32 %v327, %v328
        %v330 = vand.u32 %v329, 4294901760
        %331 = vmatmul.mubr.f32.gmra.mrb[0].mxu0 %v330
        %v332 = vpop.f32.mrb[0].mxu0
        %v333 = vadd.f32 0.0, %v332
        %v334 = vpop.f32.mrb[0].mxu0
        %335 = vmatprep.mubr.f32.mxu0 0.0
        %v336 = vand.u32 %v211, 4294901760
        %v337 = vsub.f32 %v211, %v336
        %v338 = vand.u32 %v337, 4294901760
        %v339 = vsub.f32 %v337, %v338
        %v340 = vand.u32 %v339, 4294901760
        %341 = vmatmul.mubr.f32.gmra.mrb[0].mxu0 %v340
        %v342 = vpop.f32.mrb[0].mxu0
        %v343 = vadd.f32 0.0, %v342
        %v344 = vpop.f32.mrb[0].mxu0
        %345 = vmatprep.mubr.f32.mxu0 0.0
        %v346 = vand.u32 %v214, 4294901760
        %v347 = vsub.f32 %v214, %v346
        %v348 = vand.u32 %v347, 4294901760
        %v349 = vsub.f32 %v347, %v348
        %v350 = vand.u32 %v349, 4294901760
        %351 = vmatmul.mubr.f32.gmra.mrb[0].mxu0 %v350
        %v352 = vpop.f32.mrb[0].mxu0
        %v353 = vadd.f32 0.0, %v352
        %v354 = vpop.f32.mrb[0].mxu0
        %355 = vmatprep.mubr.f32.mxu0 0.0
        %v356 = vand.u32 %v217, 4294901760
        %v357 = vsub.f32 %v217, %v356
        %v358 = vand.u32 %v357, 4294901760
        %v359 = vsub.f32 %v357, %v358
        %v360 = vand.u32 %v359, 4294901760
        %361 = vmatmul.mubr.f32.gmra.mrb[0].mxu0 %v360
        %v362 = vpop.f32.mrb[0].mxu0
        %v363 = vadd.f32 0.0, %v362
        %v364 = vpop.f32.mrb[0].mxu0
        %365 = vdwg.mxu0
        %366 = vmatprep.subr.mxu0 0.0
        %v367 = vand.u32 %v192, 4294901760
        %v368 = vsub.f32 %v192, %v367
        %v369 = vand.u32 %v368, 4294901760
        %v370 = vsub.f32 %v368, %v369
        %v371 = vand.u32 %v370, 4294901760
        %372 = vmatpush1.msra.mxu0 %v371
        %373 = vmatprep.subr.mxu0 0.0
        %v374 = vand.u32 %v193, 4294901760
        %v375 = vsub.f32 %v193, %v374
        %v376 = vand.u32 %v375, 4294901760
        %v377 = vsub.f32 %v375, %v376
        %v378 = vand.u32 %v377, 4294901760
        %379 = vmatpush1.msra.mxu0 %v378
        %380 = vmatprep.subr.mxu0 0.0
        %381 = vmatpush1.msra.mxu0 0.0
        %382 = vmatprep.subr.mxu0 0.0
        %383 = vmatpush1.msra.mxu0 0.0
        %384 = vmatprep.subr.mxu0 0.0
        %385 = vmatpush1.msra.mxu0 0.0
        %386 = vmatprep.subr.mxu0 0.0
        %387 = vmatpush1.msra.mxu0 0.0
        %388 = vmatprep.subr.mxu0 0.0
        %389 = vmatpush1.msra.mxu0 0.0
        %390 = vmatprep.subr.mxu0 0.0
        %391 = vmatpush1.msra.mxu0 0.0
        %392 = vmatprep.subr.mxu0 0.0
        %393 = vmatpush1.msra.mxu0 0.0
        %394 = vmatprep.subr.mxu0 0.0
        %395 = vmatpush1.msra.mxu0 0.0
        %396 = vmatprep.subr.mxu0 0.0
        %397 = vmatpush1.msra.mxu0 0.0
        %398 = vmatprep.subr.mxu0 0.0
        %399 = vmatpush1.msra.mxu0 0.0
        %400 = vmatprep.subr.mxu0 0.0
        %401 = vmatpush1.msra.mxu0 0.0
        %402 = vmatprep.subr.mxu0 0.0
        %403 = vmatpush1.msra.mxu0 0.0
        %404 = vmatprep.subr.mxu0 0.0
        %405 = vmatpush1.msra.mxu0 0.0
        %406 = vmatprep.subr.mxu0 0.0
        %407 = vmatpush1.msra.mxu0 0.0
        %408 = vmatprep.subr.mxu0 0.0
        %409 = vmatpush1.msra.mxu0 0.0
        %410 = vmatprep.subr.mxu0 0.0
        %411 = vmatpush1.msra.mxu0 0.0
        %412 = vmatprep.subr.mxu0 0.0
        %413 = vmatpush1.msra.mxu0 0.0
        %414 = vmatprep.subr.mxu0 0.0
        %415 = vmatpush1.msra.mxu0 0.0
        %416 = vmatprep.subr.mxu0 0.0
        %417 = vmatpush1.msra.mxu0 0.0
        %418 = vmatprep.subr.mxu0 0.0
        %419 = vmatpush1.msra.mxu0 0.0
        %420 = vmatprep.subr.mxu0 0.0
        %421 = vmatpush1.msra.mxu0 0.0
        %422 = vmatprep.subr.mxu0 0.0
        %423 = vmatpush1.msra.mxu0 0.0
        %424 = vmatprep.subr.mxu0 0.0
        %425 = vmatpush1.msra.mxu0 0.0
        %426 = vmatprep.subr.mxu0 0.0
        %427 = vmatpush1.msra.mxu0 0.0
        %428 = vmatprep.subr.mxu0 0.0
        %429 = vmatpush1.msra.mxu0 0.0
        %430 = vmatprep.subr.mxu0 0.0
        %431 = vmatpush1.msra.mxu0 0.0
        %432 = vmatprep.subr.mxu0 0.0
        %433 = vmatpush1.msra.mxu0 0.0
        %434 = vmatprep.subr.mxu0 0.0
        %435 = vmatpush1.msra.mxu0 0.0
        %436 = vmatprep.subr.mxu0 0.0
        %437 = vmatpush1.msra.mxu0 0.0
        %438 = vmatprep.subr.mxu0 0.0
        %439 = vmatpush1.msra.mxu0 0.0
        %440 = vmatprep.mubr.f32.mxu0 0.0
        %v441 = vand.u32 %v196, 4294901760
        %442 = vmatmul.mubr.f32.gmra.mrb[0].mxu0 %v441
        %v443 = vpop.f32.mrb[0].mxu0
        %v444 = vadd.f32 %v293, %v443
        %v445 = vpop.f32.mrb[0].mxu0
        %446 = vmatprep.mubr.f32.mxu0 0.0
        %v447 = vand.u32 %v199, 4294901760
        %448 = vmatmul.mubr.f32.gmra.mrb[0].mxu0 %v447
        %v449 = vpop.f32.mrb[0].mxu0
        %v450 = vadd.f32 %v303, %v449
        %v451 = vpop.f32.mrb[0].mxu0
        %452 = vmatprep.mubr.f32.mxu0 0.0
        %v453 = vand.u32 %v202, 4294901760
        %454 = vmatmul.mubr.f32.gmra.mrb[0].mxu0 %v453
        %v455 = vpop.f32.mrb[0].mxu0
        %v456 = vadd.f32 %v313, %v455
        %v457 = vpop.f32.mrb[0].mxu0
        %458 = vmatprep.mubr.f32.mxu0 0.0
        %v459 = vand.u32 %v205, 4294901760
        %460 = vmatmul.mubr.f32.gmra.mrb[0].mxu0 %v459
        %v461 = vpop.f32.mrb[0].mxu0
        %v462 = vadd.f32 %v323, %v461
        %v463 = vpop.f32.mrb[0].mxu0
        %464 = vmatprep.mubr.f32.mxu0 0.0
        %v465 = vand.u32 %v208, 4294901760
        %466 = vmatmul.mubr.f32.gmra.mrb[0].mxu0 %v465
        %v467 = vpop.f32.mrb[0].mxu0
        %v468 = vadd.f32 %v333, %v467
        %v469 = vpop.f32.mrb[0].mxu0
        %470 = vmatprep.mubr.f32.mxu0 0.0
        %v471 = vand.u32 %v211, 4294901760
        %472 = vmatmul.mubr.f32.gmra.mrb[0].mxu0 %v471
        %v473 = vpop.f32.mrb[0].mxu0
        %v474 = vadd.f32 %v343, %v473
        %v475 = vpop.f32.mrb[0].mxu0
        %476 = vmatprep.mubr.f32.mxu0 0.0
        %v477 = vand.u32 %v214, 4294901760
        %478 = vmatmul.mubr.f32.gmra.mrb[0].mxu0 %v477
        %v479 = vpop.f32.mrb[0].mxu0
        %v480 = vadd.f32 %v353, %v479
        %v481 = vpop.f32.mrb[0].mxu0
        %482 = vmatprep.mubr.f32.mxu0 0.0
        %v483 = vand.u32 %v217, 4294901760
        %484 = vmatmul.mubr.f32.gmra.mrb[0].mxu0 %v483
        %v485 = vpop.f32.mrb[0].mxu0
        %v486 = vadd.f32 %v363, %v485
        %v487 = vpop.f32.mrb[0].mxu0
        %488 = vdwg.mxu0
        %489 = vmatprep.subr.mxu0 0.0
        %v490 = vand.u32 %v192, 4294901760
        %v491 = vsub.f32 %v192, %v490
        %492 = vmatpush1.msra.mxu0 %v491
        %493 = vmatprep.subr.mxu0 0.0
        %v494 = vand.u32 %v193, 4294901760
        %v495 = vsub.f32 %v193, %v494
        %496 = vmatpush1.msra.mxu0 %v495
        %497 = vmatprep.subr.mxu0 0.0
        %498 = vmatpush1.msra.mxu0 0.0
        %499 = vmatprep.subr.mxu0 0.0
        %500 = vmatpush1.msra.mxu0 0.0
        %501 = vmatprep.subr.mxu0 0.0
        %502 = vmatpush1.msra.mxu0 0.0
        %503 = vmatprep.subr.mxu0 0.0
        %504 = vmatpush1.msra.mxu0 0.0
        %505 = vmatprep.subr.mxu0 0.0
        %506 = vmatpush1.msra.mxu0 0.0
        %507 = vmatprep.subr.mxu0 0.0
        %508 = vmatpush1.msra.mxu0 0.0
        %509 = vmatprep.subr.mxu0 0.0
        %510 = vmatpush1.msra.mxu0 0.0
        %511 = vmatprep.subr.mxu0 0.0
        %512 = vmatpush1.msra.mxu0 0.0
        %513 = vmatprep.subr.mxu0 0.0
        %514 = vmatpush1.msra.mxu0 0.0
        %515 = vmatprep.subr.mxu0 0.0
        %516 = vmatpush1.msra.mxu0 0.0
        %517 = vmatprep.subr.mxu0 0.0
        %518 = vmatpush1.msra.mxu0 0.0
        %519 = vmatprep.subr.mxu0 0.0
        %520 = vmatpush1.msra.mxu0 0.0
        %521 = vmatprep.subr.mxu0 0.0
        %522 = vmatpush1.msra.mxu0 0.0
        %523 = vmatprep.subr.mxu0 0.0
        %524 = vmatpush1.msra.mxu0 0.0
        %525 = vmatprep.subr.mxu0 0.0
        %526 = vmatpush1.msra.mxu0 0.0
        %527 = vmatprep.subr.mxu0 0.0
        %528 = vmatpush1.msra.mxu0 0.0
        %529 = vmatprep.subr.mxu0 0.0
        %530 = vmatpush1.msra.mxu0 0.0
        %531 = vmatprep.subr.mxu0 0.0
        %532 = vmatpush1.msra.mxu0 0.0
        %533 = vmatprep.subr.mxu0 0.0
        %534 = vmatpush1.msra.mxu0 0.0
        %535 = vmatprep.subr.mxu0 0.0
        %536 = vmatpush1.msra.mxu0 0.0
        %537 = vmatprep.subr.mxu0 0.0
        %538 = vmatpush1.msra.mxu0 0.0
        %539 = vmatprep.subr.mxu0 0.0
        %540 = vmatpush1.msra.mxu0 0.0
        %541 = vmatprep.subr.mxu0 0.0
        %542 = vmatpush1.msra.mxu0 0.0
        %543 = vmatprep.subr.mxu0 0.0
        %544 = vmatpush1.msra.mxu0 0.0
        %545 = vmatprep.subr.mxu0 0.0
        %546 = vmatpush1.msra.mxu0 0.0
        %547 = vmatprep.subr.mxu0 0.0
        %548 = vmatpush1.msra.mxu0 0.0
        %549 = vmatprep.subr.mxu0 0.0
        %550 = vmatpush1.msra.mxu0 0.0
        %551 = vmatprep.subr.mxu0 0.0
        %552 = vmatpush1.msra.mxu0 0.0
        %553 = vmatprep.subr.mxu0 0.0
        %554 = vmatpush1.msra.mxu0 0.0
        %555 = vmatprep.subr.mxu0 0.0
        %556 = vmatpush1.msra.mxu0 0.0
        %557 = vmatprep.mubr.f32.mxu0 0.0
        %v558 = vand.u32 %v196, 4294901760
        %v559 = vsub.f32 %v196, %v558
        %560 = vmatmul.mubr.f32.gmra.mrb[0].mxu0 %v559
        %v561 = vpop.f32.mrb[0].mxu0
        %v562 = vadd.f32 %v444, %v561
        %v563 = vpop.f32.mrb[0].mxu0
        %564 = vmatprep.mubr.f32.mxu0 0.0
        %v565 = vand.u32 %v199, 4294901760
        %v566 = vsub.f32 %v199, %v565
        %567 = vmatmul.mubr.f32.gmra.mrb[0].mxu0 %v566
        %v568 = vpop.f32.mrb[0].mxu0
        %v569 = vadd.f32 %v450, %v568
        %v570 = vpop.f32.mrb[0].mxu0
        %571 = vmatprep.mubr.f32.mxu0 0.0
        %v572 = vand.u32 %v202, 4294901760
        %v573 = vsub.f32 %v202, %v572
        %574 = vmatmul.mubr.f32.gmra.mrb[0].mxu0 %v573
        %v575 = vpop.f32.mrb[0].mxu0
        %v576 = vadd.f32 %v456, %v575
        %v577 = vpop.f32.mrb[0].mxu0
        %578 = vmatprep.mubr.f32.mxu0 0.0
        %v579 = vand.u32 %v205, 4294901760
        %v580 = vsub.f32 %v205, %v579
        %581 = vmatmul.mubr.f32.gmra.mrb[0].mxu0 %v580
        %v582 = vpop.f32.mrb[0].mxu0
        %v583 = vadd.f32 %v462, %v582
        %v584 = vpop.f32.mrb[0].mxu0
        %585 = vmatprep.mubr.f32.mxu0 0.0
        %v586 = vand.u32 %v208, 4294901760
        %v587 = vsub.f32 %v208, %v586
        %588 = vmatmul.mubr.f32.gmra.mrb[0].mxu0 %v587
        %v589 = vpop.f32.mrb[0].mxu0
        %v590 = vadd.f32 %v468, %v589
        %v591 = vpop.f32.mrb[0].mxu0
        %592 = vmatprep.mubr.f32.mxu0 0.0
        %v593 = vand.u32 %v211, 4294901760
        %v594 = vsub.f32 %v211, %v593
        %595 = vmatmul.mubr.f32.gmra.mrb[0].mxu0 %v594
        %v596 = vpop.f32.mrb[0].mxu0
        %v597 = vadd.f32 %v474, %v596
        %v598 = vpop.f32.mrb[0].mxu0
        %599 = vmatprep.mubr.f32.mxu0 0.0
        %v600 = vand.u32 %v214, 4294901760
        %v601 = vsub.f32 %v214, %v600
        %602 = vmatmul.mubr.f32.gmra.mrb[0].mxu0 %v601
        %v603 = vpop.f32.mrb[0].mxu0
        %v604 = vadd.f32 %v480, %v603
        %v605 = vpop.f32.mrb[0].mxu0
        %606 = vmatprep.mubr.f32.mxu0 0.0
        %v607 = vand.u32 %v217, 4294901760
        %v608 = vsub.f32 %v217, %v607
        %609 = vmatmul.mubr.f32.gmra.mrb[0].mxu0 %v608
        %v610 = vpop.f32.mrb[0].mxu0
        %v611 = vadd.f32 %v486, %v610
        %v612 = vpop.f32.mrb[0].mxu0
        %613 = vdwg.mxu0
        %614 = vmatprep.subr.mxu0 0.0
        %v615 = vand.u32 %v192, 4294901760
        %616 = vmatpush1.msra.mxu0 %v615
        %617 = vmatprep.subr.mxu0 0.0
        %v618 = vand.u32 %v193, 4294901760
        %619 = vmatpush1.msra.mxu0 %v618
        %620 = vmatprep.subr.mxu0 0.0
        %621 = vmatpush1.msra.mxu0 0.0
        %622 = vmatprep.subr.mxu0 0.0
        %623 = vmatpush1.msra.mxu0 0.0
        %624 = vmatprep.subr.mxu0 0.0
        %625 = vmatpush1.msra.mxu0 0.0
        %626 = vmatprep.subr.mxu0 0.0
        %627 = vmatpush1.msra.mxu0 0.0
        %628 = vmatprep.subr.mxu0 0.0
        %629 = vmatpush1.msra.mxu0 0.0
        %630 = vmatprep.subr.mxu0 0.0
        %631 = vmatpush1.msra.mxu0 0.0
        %632 = vmatprep.subr.mxu0 0.0
        %633 = vmatpush1.msra.mxu0 0.0
        %634 = vmatprep.subr.mxu0 0.0
        %635 = vmatpush1.msra.mxu0 0.0
        %636 = vmatprep.subr.mxu0 0.0
        %637 = vmatpush1.msra.mxu0 0.0
        %638 = vmatprep.subr.mxu0 0.0
        %639 = vmatpush1.msra.mxu0 0.0
        %640 = vmatprep.subr.mxu0 0.0
        %641 = vmatpush1.msra.mxu0 0.0
        %642 = vmatprep.subr.mxu0 0.0
        %643 = vmatpush1.msra.mxu0 0.0
        %644 = vmatprep.subr.mxu0 0.0
        %645 = vmatpush1.msra.mxu0 0.0
        %646 = vmatprep.subr.mxu0 0.0
        %647 = vmatpush1.msra.mxu0 0.0
        %648 = vmatprep.subr.mxu0 0.0
        %649 = vmatpush1.msra.mxu0 0.0
        %650 = vmatprep.subr.mxu0 0.0
        %651 = vmatpush1.msra.mxu0 0.0
        %652 = vmatprep.subr.mxu0 0.0
        %653 = vmatpush1.msra.mxu0 0.0
        %654 = vmatprep.subr.mxu0 0.0
        %655 = vmatpush1.msra.mxu0 0.0
        %656 = vmatprep.subr.mxu0 0.0
        %657 = vmatpush1.msra.mxu0 0.0
        %658 = vmatprep.subr.mxu0 0.0
        %659 = vmatpush1.msra.mxu0 0.0
        %660 = vmatprep.subr.mxu0 0.0
        %661 = vmatpush1.msra.mxu0 0.0
        %662 = vmatprep.subr.mxu0 0.0
        %663 = vmatpush1.msra.mxu0 0.0
        %664 = vmatprep.subr.mxu0 0.0
        %665 = vmatpush1.msra.mxu0 0.0
        %666 = vmatprep.subr.mxu0 0.0
        %667 = vmatpush1.msra.mxu0 0.0
        %668 = vmatprep.subr.mxu0 0.0
        %669 = vmatpush1.msra.mxu0 0.0
        %670 = vmatprep.subr.mxu0 0.0
        %671 = vmatpush1.msra.mxu0 0.0
        %672 = vmatprep.subr.mxu0 0.0
        %673 = vmatpush1.msra.mxu0 0.0
        %674 = vmatprep.subr.mxu0 0.0
        %675 = vmatpush1.msra.mxu0 0.0
        %676 = vmatprep.subr.mxu0 0.0
        %677 = vmatpush1.msra.mxu0 0.0
        %678 = vmatprep.subr.mxu0 0.0
        %679 = vmatpush1.msra.mxu0 0.0
        %680 = vmatprep.mubr.f32.mxu0 0.0
        %v681 = vand.u32 %v196, 4294901760
        %v682 = vsub.f32 %v196, %v681
        %v683 = vand.u32 %v682, 4294901760
        %684 = vmatmul.mubr.f32.gmra.mrb[0].mxu0 %v683
        %v685 = vpop.f32.mrb[0].mxu0
        %v686 = vadd.f32 %v562, %v685
        %v687 = vpop.f32.mrb[0].mxu0
        %688 = vmatprep.mubr.f32.mxu0 0.0
        %v689 = vand.u32 %v199, 4294901760
        %v690 = vsub.f32 %v199, %v689
        %v691 = vand.u32 %v690, 4294901760
        %692 = vmatmul.mubr.f32.gmra.mrb[0].mxu0 %v691
        %v693 = vpop.f32.mrb[0].mxu0
        %v694 = vadd.f32 %v569, %v693
        %v695 = vpop.f32.mrb[0].mxu0
        %696 = vmatprep.mubr.f32.mxu0 0.0
        %v697 = vand.u32 %v202, 4294901760
        %v698 = vsub.f32 %v202, %v697
        %v699 = vand.u32 %v698, 4294901760
        %700 = vmatmul.mubr.f32.gmra.mrb[0].mxu0 %v699
        %v701 = vpop.f32.mrb[0].mxu0
        %v702 = vadd.f32 %v576, %v701
        %v703 = vpop.f32.mrb[0].mxu0
        %704 = vmatprep.mubr.f32.mxu0 0.0
        %v705 = vand.u32 %v205, 4294901760
        %v706 = vsub.f32 %v205, %v705
        %v707 = vand.u32 %v706, 4294901760
        %708 = vmatmul.mubr.f32.gmra.mrb[0].mxu0 %v707
        %v709 = vpop.f32.mrb[0].mxu0
        %v710 = vadd.f32 %v583, %v709
        %v711 = vpop.f32.mrb[0].mxu0
        %712 = vmatprep.mubr.f32.mxu0 0.0
        %v713 = vand.u32 %v208, 4294901760
        %v714 = vsub.f32 %v208, %v713
        %v715 = vand.u32 %v714, 4294901760
        %716 = vmatmul.mubr.f32.gmra.mrb[0].mxu0 %v715
        %v717 = vpop.f32.mrb[0].mxu0
        %v718 = vadd.f32 %v590, %v717
        %v719 = vpop.f32.mrb[0].mxu0
        %720 = vmatprep.mubr.f32.mxu0 0.0
        %v721 = vand.u32 %v211, 4294901760
        %v722 = vsub.f32 %v211, %v721
        %v723 = vand.u32 %v722, 4294901760
        %724 = vmatmul.mubr.f32.gmra.mrb[0].mxu0 %v723
        %v725 = vpop.f32.mrb[0].mxu0
        %v726 = vadd.f32 %v597, %v725
        %v727 = vpop.f32.mrb[0].mxu0
        %728 = vmatprep.mubr.f32.mxu0 0.0
        %v729 = vand.u32 %v214, 4294901760
        %v730 = vsub.f32 %v214, %v729
        %v731 = vand.u32 %v730, 4294901760
        %732 = vmatmul.mubr.f32.gmra.mrb[0].mxu0 %v731
        %v733 = vpop.f32.mrb[0].mxu0
        %v734 = vadd.f32 %v604, %v733
        %v735 = vpop.f32.mrb[0].mxu0
        %736 = vmatprep.mubr.f32.mxu0 0.0
        %v737 = vand.u32 %v217, 4294901760
        %v738 = vsub.f32 %v217, %v737
        %v739 = vand.u32 %v738, 4294901760
        %740 = vmatmul.mubr.f32.gmra.mrb[0].mxu0 %v739
        %v741 = vpop.f32.mrb[0].mxu0
        %v742 = vadd.f32 %v611, %v741
        %v743 = vpop.f32.mrb[0].mxu0
        %744 = vdwg.mxu0
        %745 = vmatprep.subr.mxu0 0.0
        %v746 = vand.u32 %v192, 4294901760
        %v747 = vsub.f32 %v192, %v746
        %v748 = vand.u32 %v747, 4294901760
        %749 = vmatpush1.msra.mxu0 %v748
        %750 = vmatprep.subr.mxu0 0.0
        %v751 = vand.u32 %v193, 4294901760
        %v752 = vsub.f32 %v193, %v751
        %v753 = vand.u32 %v752, 4294901760
        %754 = vmatpush1.msra.mxu0 %v753
        %755 = vmatprep.subr.mxu0 0.0
        %756 = vmatpush1.msra.mxu0 0.0
        %757 = vmatprep.subr.mxu0 0.0
        %758 = vmatpush1.msra.mxu0 0.0
        %759 = vmatprep.subr.mxu0 0.0
        %760 = vmatpush1.msra.mxu0 0.0
        %761 = vmatprep.subr.mxu0 0.0
        %762 = vmatpush1.msra.mxu0 0.0
        %763 = vmatprep.subr.mxu0 0.0
        %764 = vmatpush1.msra.mxu0 0.0
        %765 = vmatprep.subr.mxu0 0.0
        %766 = vmatpush1.msra.mxu0 0.0
        %767 = vmatprep.subr.mxu0 0.0
        %768 = vmatpush1.msra.mxu0 0.0
        %769 = vmatprep.subr.mxu0 0.0
        %770 = vmatpush1.msra.mxu0 0.0
        %771 = vmatprep.subr.mxu0 0.0
        %772 = vmatpush1.msra.mxu0 0.0
        %773 = vmatprep.subr.mxu0 0.0
        %774 = vmatpush1.msra.mxu0 0.0
        %775 = vmatprep.subr.mxu0 0.0
        %776 = vmatpush1.msra.mxu0 0.0
        %777 = vmatprep.subr.mxu0 0.0
        %778 = vmatpush1.msra.mxu0 0.0
        %779 = vmatprep.subr.mxu0 0.0
        %780 = vmatpush1.msra.mxu0 0.0
        %781 = vmatprep.subr.mxu0 0.0
        %782 = vmatpush1.msra.mxu0 0.0
        %783 = vmatprep.subr.mxu0 0.0
        %784 = vmatpush1.msra.mxu0 0.0
        %785 = vmatprep.subr.mxu0 0.0
        %786 = vmatpush1.msra.mxu0 0.0
        %787 = vmatprep.subr.mxu0 0.0
        %788 = vmatpush1.msra.mxu0 0.0
        %789 = vmatprep.subr.mxu0 0.0
        %790 = vmatpush1.msra.mxu0 0.0
        %791 = vmatprep.subr.mxu0 0.0
        %792 = vmatpush1.msra.mxu0 0.0
        %793 = vmatprep.subr.mxu0 0.0
        %794 = vmatpush1.msra.mxu0 0.0
        %795 = vmatprep.subr.mxu0 0.0
        %796 = vmatpush1.msra.mxu0 0.0
        %797 = vmatprep.subr.mxu0 0.0
        %798 = vmatpush1.msra.mxu0 0.0
        %799 = vmatprep.subr.mxu0 0.0
        %800 = vmatpush1.msra.mxu0 0.0
        %801 = vmatprep.subr.mxu0 0.0
        %802 = vmatpush1.msra.mxu0 0.0
        %803 = vmatprep.subr.mxu0 0.0
        %804 = vmatpush1.msra.mxu0 0.0
        %805 = vmatprep.subr.mxu0 0.0
        %806 = vmatpush1.msra.mxu0 0.0
        %807 = vmatprep.subr.mxu0 0.0
        %808 = vmatpush1.msra.mxu0 0.0
        %809 = vmatprep.subr.mxu0 0.0
        %810 = vmatpush1.msra.mxu0 0.0
        %811 = vmatprep.subr.mxu0 0.0
        %812 = vmatpush1.msra.mxu0 0.0
        %813 = vmatprep.subr.mxu0 0.0
        %814 = vmatpush1.msra.mxu0 0.0
        %815 = vmatprep.mubr.f32.mxu0 0.0
        %v816 = vand.u32 %v196, 4294901760
        %817 = vmatmul.mubr.f32.gmra.mrb[0].mxu0 %v816
        %v818 = vpop.f32.mrb[0].mxu0
        %v819 = vadd.f32 %v686, %v818
        %v820 = vpop.f32.mrb[0].mxu0
        %821 = vmatprep.mubr.f32.mxu0 0.0
        %v822 = vand.u32 %v199, 4294901760
        %823 = vmatmul.mubr.f32.gmra.mrb[0].mxu0 %v822
        %v824 = vpop.f32.mrb[0].mxu0
        %v825 = vadd.f32 %v694, %v824
        %v826 = vpop.f32.mrb[0].mxu0
        %827 = vmatprep.mubr.f32.mxu0 0.0
        %v828 = vand.u32 %v202, 4294901760
        %829 = vmatmul.mubr.f32.gmra.mrb[0].mxu0 %v828
        %v830 = vpop.f32.mrb[0].mxu0
        %v831 = vadd.f32 %v702, %v830
        %v832 = vpop.f32.mrb[0].mxu0
        %833 = vmatprep.mubr.f32.mxu0 0.0
        %v834 = vand.u32 %v205, 4294901760
        %835 = vmatmul.mubr.f32.gmra.mrb[0].mxu0 %v834
        %v836 = vpop.f32.mrb[0].mxu0
        %v837 = vadd.f32 %v710, %v836
        %v838 = vpop.f32.mrb[0].mxu0
        %839 = vmatprep.mubr.f32.mxu0 0.0
        %v840 = vand.u32 %v208, 4294901760
        %841 = vmatmul.mubr.f32.gmra.mrb[0].mxu0 %v840
        %v842 = vpop.f32.mrb[0].mxu0
        %v843 = vadd.f32 %v718, %v842
        %v844 = vpop.f32.mrb[0].mxu0
        %845 = vmatprep.mubr.f32.mxu0 0.0
        %v846 = vand.u32 %v211, 4294901760
        %847 = vmatmul.mubr.f32.gmra.mrb[0].mxu0 %v846
        %v848 = vpop.f32.mrb[0].mxu0
        %v849 = vadd.f32 %v726, %v848
        %v850 = vpop.f32.mrb[0].mxu0
        %851 = vmatprep.mubr.f32.mxu0 0.0
        %v852 = vand.u32 %v214, 4294901760
        %853 = vmatmul.mubr.f32.gmra.mrb[0].mxu0 %v852
        %v854 = vpop.f32.mrb[0].mxu0
        %v855 = vadd.f32 %v734, %v854
        %v856 = vpop.f32.mrb[0].mxu0
        %857 = vmatprep.mubr.f32.mxu0 0.0
        %v858 = vand.u32 %v217, 4294901760
        %859 = vmatmul.mubr.f32.gmra.mrb[0].mxu0 %v858
        %v860 = vpop.f32.mrb[0].mxu0
        %v861 = vadd.f32 %v742, %v860
        %v862 = vpop.f32.mrb[0].mxu0
        %863 = vdwg.mxu0
        %864 = vmatprep.subr.mxu0 0.0
        %v865 = vand.u32 %v192, 4294901760
        %866 = vmatpush1.msra.mxu0 %v865
        %867 = vmatprep.subr.mxu0 0.0
        %v868 = vand.u32 %v193, 4294901760
        %869 = vmatpush1.msra.mxu0 %v868
        %870 = vmatprep.subr.mxu0 0.0
        %871 = vmatpush1.msra.mxu0 0.0
        %872 = vmatprep.subr.mxu0 0.0
        %873 = vmatpush1.msra.mxu0 0.0
        %874 = vmatprep.subr.mxu0 0.0
        %875 = vmatpush1.msra.mxu0 0.0
        %876 = vmatprep.subr.mxu0 0.0
        %877 = vmatpush1.msra.mxu0 0.0
        %878 = vmatprep.subr.mxu0 0.0
        %879 = vmatpush1.msra.mxu0 0.0
        %880 = vmatprep.subr.mxu0 0.0
        %881 = vmatpush1.msra.mxu0 0.0
        %882 = vmatprep.subr.mxu0 0.0
        %883 = vmatpush1.msra.mxu0 0.0
        %884 = vmatprep.subr.mxu0 0.0
        %885 = vmatpush1.msra.mxu0 0.0
        %886 = vmatprep.subr.mxu0 0.0
        %887 = vmatpush1.msra.mxu0 0.0
        %888 = vmatprep.subr.mxu0 0.0
        %889 = vmatpush1.msra.mxu0 0.0
        %890 = vmatprep.subr.mxu0 0.0
        %891 = vmatpush1.msra.mxu0 0.0
        %892 = vmatprep.subr.mxu0 0.0
        %893 = vmatpush1.msra.mxu0 0.0
        %894 = vmatprep.subr.mxu0 0.0
        %895 = vmatpush1.msra.mxu0 0.0
        %896 = vmatprep.subr.mxu0 0.0
        %897 = vmatpush1.msra.mxu0 0.0
        %898 = vmatprep.subr.mxu0 0.0
        %899 = vmatpush1.msra.mxu0 0.0
        %900 = vmatprep.subr.mxu0 0.0
        %901 = vmatpush1.msra.mxu0 0.0
        %902 = vmatprep.subr.mxu0 0.0
        %903 = vmatpush1.msra.mxu0 0.0
        %904 = vmatprep.subr.mxu0 0.0
        %905 = vmatpush1.msra.mxu0 0.0
        %906 = vmatprep.subr.mxu0 0.0
        %907 = vmatpush1.msra.mxu0 0.0
        %908 = vmatprep.subr.mxu0 0.0
        %909 = vmatpush1.msra.mxu0 0.0
        %910 = vmatprep.subr.mxu0 0.0
        %911 = vmatpush1.msra.mxu0 0.0
        %912 = vmatprep.subr.mxu0 0.0
        %913 = vmatpush1.msra.mxu0 0.0
        %914 = vmatprep.subr.mxu0 0.0
        %915 = vmatpush1.msra.mxu0 0.0
        %916 = vmatprep.subr.mxu0 0.0
        %917 = vmatpush1.msra.mxu0 0.0
        %918 = vmatprep.subr.mxu0 0.0
        %919 = vmatpush1.msra.mxu0 0.0
        %920 = vmatprep.subr.mxu0 0.0
        %921 = vmatpush1.msra.mxu0 0.0
        %922 = vmatprep.subr.mxu0 0.0
        %923 = vmatpush1.msra.mxu0 0.0
        %924 = vmatprep.subr.mxu0 0.0
        %925 = vmatpush1.msra.mxu0 0.0
        %926 = vmatprep.subr.mxu0 0.0
        %927 = vmatpush1.msra.mxu0 0.0
        %928 = vmatprep.subr.mxu0 0.0
        %929 = vmatpush1.msra.mxu0 0.0
        %930 = vmatprep.mubr.f32.mxu0 0.0
        %v931 = vand.u32 %v196, 4294901760
        %932 = vmatmul.mubr.f32.gmra.mrb[0].mxu0 %v931
        %v933 = vpop.f32.mrb[0].mxu0
        %v934 = vadd.f32 %v819, %v933
        %v935 = vpop.f32.mrb[0].mxu0
        %936 = vmatprep.mubr.f32.mxu0 0.0
        %v937 = vand.u32 %v199, 4294901760
        %938 = vmatmul.mubr.f32.gmra.mrb[0].mxu0 %v937
        %v939 = vpop.f32.mrb[0].mxu0
        %v940 = vadd.f32 %v825, %v939
        %v941 = vpop.f32.mrb[0].mxu0
        %942 = vmatprep.mubr.f32.mxu0 0.0
        %v943 = vand.u32 %v202, 4294901760
        %944 = vmatmul.mubr.f32.gmra.mrb[0].mxu0 %v943
        %v945 = vpop.f32.mrb[0].mxu0
        %v946 = vadd.f32 %v831, %v945
        %v947 = vpop.f32.mrb[0].mxu0
        %948 = vmatprep.mubr.f32.mxu0 0.0
        %v949 = vand.u32 %v205, 4294901760
        %950 = vmatmul.mubr.f32.gmra.mrb[0].mxu0 %v949
        %v951 = vpop.f32.mrb[0].mxu0
        %v952 = vadd.f32 %v837, %v951
        %v953 = vpop.f32.mrb[0].mxu0
        %954 = vmatprep.mubr.f32.mxu0 0.0
        %v955 = vand.u32 %v208, 4294901760
        %956 = vmatmul.mubr.f32.gmra.mrb[0].mxu0 %v955
        %v957 = vpop.f32.mrb[0].mxu0
        %v958 = vadd.f32 %v843, %v957
        %v959 = vpop.f32.mrb[0].mxu0
        %960 = vmatprep.mubr.f32.mxu0 0.0
        %v961 = vand.u32 %v211, 4294901760
        %962 = vmatmul.mubr.f32.gmra.mrb[0].mxu0 %v961
        %v963 = vpop.f32.mrb[0].mxu0
        %v964 = vadd.f32 %v849, %v963
        %v965 = vpop.f32.mrb[0].mxu0
        %966 = vmatprep.mubr.f32.mxu0 0.0
        %v967 = vand.u32 %v214, 4294901760
        %968 = vmatmul.mubr.f32.gmra.mrb[0].mxu0 %v967
        %v969 = vpop.f32.mrb[0].mxu0
        %v970 = vadd.f32 %v855, %v969
        %v971 = vpop.f32.mrb[0].mxu0
        %972 = vmatprep.mubr.f32.mxu0 0.0
        %v973 = vand.u32 %v217, 4294901760
        %974 = vmatmul.mubr.f32.gmra.mrb[0].mxu0 %v973
        %v975 = vpop.f32.mrb[0].mxu0
        %v976 = vadd.f32 %v861, %v975
        %v977 = vpop.f32.mrb[0].mxu0
        %978 = vdwg.mxu0
        %vm979 = vcmask 97280
        %980 = vst.msk [vmem:[#allocation2] sm:$0xff] %vm979, %v934
        %981 = vst.msk [vmem:[#allocation2 + $0x8] sm:$0xff] %vm979, %v940
        %982 = vst.msk [vmem:[#allocation2 + $0x10] sm:$0xff] %vm979, %v946
        %983 = vst.msk [vmem:[#allocation2 + $0x18] sm:$0xff] %vm979, %v952
        %984 = vst.msk [vmem:[#allocation2 + $0x20] sm:$0xff] %vm979, %v958
        %985 = vst.msk [vmem:[#allocation2 + $0x28] sm:$0xff] %vm979, %v964
        %986 = vst.msk [vmem:[#allocation2 + $0x30] sm:$0xff] %vm979, %v970
        %987 = vst.msk [vmem:[#allocation2 + $0x38] sm:$0xff] %vm979, %v976
        %v988 = vld [vmem:[#allocation2] sm:$0xff]
        %v989 = vld [vmem:[#allocation2 + $0x8] sm:$0xf]
        %v990 = vld [vmem:[#allocation2 + $0x10] sm:$0xff]
        %v991 = vld [vmem:[#allocation2 + $0x18] sm:$0xf]
        %v992 = vld [vmem:[#allocation2 + $0x20] sm:$0xff]
        %v993 = vld [vmem:[#allocation2 + $0x28] sm:$0xf]
        %v994 = vld [vmem:[#allocation2 + $0x30] sm:$0xff]
        %v995 = vld [vmem:[#allocation2 + $0x38] sm:$0xf]
        %v996 = vmul.f32 %v988, 0.15246914
        %v997 = vmul.f32 %v989, 0.15246914
        %v998 = vmul.f32 %v990, 0.15246914
        %v999 = vmul.f32 %v991, 0.15246914
        %v1000 = vmul.f32 %v992, 0.15246914
        %v1001 = vmul.f32 %v993, 0.15246914
        %v1002 = vmul.f32 %v994, 0.15246914
        %v1003 = vmul.f32 %v995, 0.15246914
        %v1004 = vld [vmem:[#allocation2 + $0x1] sm:$0xff]
        %v1005 = vld [vmem:[#allocation2 + $0x9] sm:$0xf]
        %v1006 = vld [vmem:[#allocation2 + $0x11] sm:$0xff]
        %v1007 = vld [vmem:[#allocation2 + $0x19] sm:$0xf]
        %v1008 = vld [vmem:[#allocation2 + $0x21] sm:$0xff]
        %v1009 = vld [vmem:[#allocation2 + $0x29] sm:$0xf]
        %v1010 = vld [vmem:[#allocation2 + $0x31] sm:$0xff]
        %v1011 = vld [vmem:[#allocation2 + $0x39] sm:$0xf]
        %v1012 = vmul.f32 %v1004, 0.22184129
        %v1013 = vmul.f32 %v1005, 0.22184129
        %v1014 = vmul.f32 %v1006, 0.22184129
        %v1015 = vmul.f32 %v1007, 0.22184129
        %v1016 = vmul.f32 %v1008, 0.22184129
        %v1017 = vmul.f32 %v1009, 0.22184129
        %v1018 = vmul.f32 %v1010, 0.22184129
        %v1019 = vmul.f32 %v1011, 0.22184129
        %v1020 = vadd.f32 %v996, %v1012
        %v1021 = vadd.f32 %v997, %v1013
        %v1022 = vadd.f32 %v998, %v1014
        %v1023 = vadd.f32 %v999, %v1015
        %v1024 = vadd.f32 %v1000, %v1016
        %v1025 = vadd.f32 %v1001, %v1017
        %v1026 = vadd.f32 %v1002, %v1018
        %v1027 = vadd.f32 %v1003, %v1019
        %v1028 = vld [vmem:[#allocation2 + $0x2] sm:$0xff]
        %v1029 = vld [vmem:[#allocation2 + $0xa] sm:$0xf]
        %v1030 = vld [vmem:[#allocation2 + $0x12] sm:$0xff]
        %v1031 = vld [vmem:[#allocation2 + $0x1a] sm:$0xf]
        %v1032 = vld [vmem:[#allocation2 + $0x22] sm:$0xff]
        %v1033 = vld [vmem:[#allocation2 + $0x2a] sm:$0xf]
        %v1034 = vld [vmem:[#allocation2 + $0x32] sm:$0xff]
        %v1035 = vld [vmem:[#allocation2 + $0x3a] sm:$0xf]
        %v1036 = vmul.f32 %v1028, 0.25137913
        %v1037 = vmul.f32 %v1029, 0.25137913
        %v1038 = vmul.f32 %v1030, 0.25137913
        %v1039 = vmul.f32 %v1031, 0.25137913
        %v1040 = vmul.f32 %v1032, 0.25137913
        %v1041 = vmul.f32 %v1033, 0.25137913
        %v1042 = vmul.f32 %v1034, 0.25137913
        %v1043 = vmul.f32 %v1035, 0.25137913
        %v1044 = vadd.f32 %v1020, %v1036
        %v1045 = vadd.f32 %v1021, %v1037
        %v1046 = vadd.f32 %v1022, %v1038
        %v1047 = vadd.f32 %v1023, %v1039
        %v1048 = vadd.f32 %v1024, %v1040
        %v1049 = vadd.f32 %v1025, %v1041
        %v1050 = vadd.f32 %v1026, %v1042
        %v1051 = vadd.f32 %v1027, %v1043
        %v1052 = vld [vmem:[#allocation2 + $0x3] sm:$0xff]
        %v1053 = vld [vmem:[#allocation2 + $0xb] sm:$0xf]
        %v1054 = vld [vmem:[#allocation2 + $0x13] sm:$0xff]
        %v1055 = vld [vmem:[#allocation2 + $0x1b] sm:$0xf]
        %v1056 = vld [vmem:[#allocation2 + $0x23] sm:$0xff]
        %v1057 = vld [vmem:[#allocation2 + $0x2b] sm:$0xf]
        %v1058 = vld [vmem:[#allocation2 + $0x33] sm:$0xff]
        %v1059 = vld [vmem:[#allocation2 + $0x3b] sm:$0xf]
        %v1060 = vmul.f32 %v1052, 0.22184129
        %v1061 = vmul.f32 %v1053, 0.22184129
        %v1062 = vmul.f32 %v1054, 0.22184129
        %v1063 = vmul.f32 %v1055, 0.22184129
        %v1064 = vmul.f32 %v1056, 0.22184129
        %v1065 = vmul.f32 %v1057, 0.22184129
        %v1066 = vmul.f32 %v1058, 0.22184129
        %v1067 = vmul.f32 %v1059, 0.22184129
        %v1068 = vadd.f32 %v1044, %v1060
        %v1069 = vadd.f32 %v1045, %v1061
        %v1070 = vadd.f32 %v1046, %v1062
        %v1071 = vadd.f32 %v1047, %v1063
        %v1072 = vadd.f32 %v1048, %v1064
        %v1073 = vadd.f32 %v1049, %v1065
        %v1074 = vadd.f32 %v1050, %v1066
        %v1075 = vadd.f32 %v1051, %v1067
        %v1076 = vld [vmem:[#allocation2 + $0x4] sm:$0xff]
        %v1077 = vld [vmem:[#allocation2 + $0xc] sm:$0xf]
        %v1078 = vld [vmem:[#allocation2 + $0x14] sm:$0xff]
        %v1079 = vld [vmem:[#allocation2 + $0x1c] sm:$0xf]
        %v1080 = vld [vmem:[#allocation2 + $0x24] sm:$0xff]
        %v1081 = vld [vmem:[#allocation2 + $0x2c] sm:$0xf]
        %v1082 = vld [vmem:[#allocation2 + $0x34] sm:$0xff]
        %v1083 = vld [vmem:[#allocation2 + $0x3c] sm:$0xf]
        %v1084 = vmul.f32 %v1076, 0.15246914
        %v1085 = vmul.f32 %v1077, 0.15246914
        %v1086 = vmul.f32 %v1078, 0.15246914
        %v1087 = vmul.f32 %v1079, 0.15246914
        %v1088 = vmul.f32 %v1080, 0.15246914
        %v1089 = vmul.f32 %v1081, 0.15246914
        %v1090 = vmul.f32 %v1082, 0.15246914
        %v1091 = vmul.f32 %v1083, 0.15246914
        %v1092 = vadd.f32 %v1068, %v1084
        %v1093 = vadd.f32 %v1069, %v1085
        %v1094 = vadd.f32 %v1070, %v1086
        %v1095 = vadd.f32 %v1071, %v1087
        %v1096 = vadd.f32 %v1072, %v1088
        %v1097 = vadd.f32 %v1073, %v1089
        %v1098 = vadd.f32 %v1074, %v1090
        %v1099 = vadd.f32 %v1075, %v1091
        %1100 = vst.msk [vmem:[%s182] sm:$0xff] %vm979, %v1092
        %vm1101 = vcmask 93184
        %1102 = vst.msk [vmem:[%s182 + $0x8] sm:$0xf] %vm1101, %v1093
        %1103 = vst.msk [vmem:[%s182 + $0x10] sm:$0xff] %vm979, %v1094
        %1104 = vst.msk [vmem:[%s182 + $0x18] sm:$0xf] %vm1101, %v1095
        %1105 = vst.msk [vmem:[%s182 + $0x20] sm:$0xff] %vm979, %v1096
        %1106 = vst.msk [vmem:[%s182 + $0x28] sm:$0xf] %vm1101, %v1097
        %1107 = vst.msk [vmem:[%s182 + $0x30] sm:$0xff] %vm979, %v1098
        %1108 = vst.msk [vmem:[%s182 + $0x38] sm:$0xf] %vm1101, %v1099
        %s1109 = smul.u32 4, %s17
        %p1110 = scmp.lt.s32.totalorder %s1109, 7
        %s1111 = scalar_select %p1110, %s1109, 7
        %s1112 = smul.addr %s1111, 2
        %s1113 = smul.addr %s1112, 8
        %s1114 = scalar_lea.vmem %s2, %s1113
        // Predicated region
        $region37: #{tpu_custom_call.1} parent=27 // pred_check
          %p1115 = pneg %p82
        $region38: #{tpu_custom_call.1} parent=27 // pred_check_branch
          %1117 = sbr.rel (%p1115) target = $region40
        $region39: #{tpu_custom_call.1} parent=27 // pred_region
          %s1118 = smul.u32 4, %s17
        $region40: #{tpu_custom_call.1} parent=27 // pred_fallthru
          _
      $region28: #{tpu_custom_call.1} parent=5 // pred_fallthru
        _
      %p1119 = scmp.le.s32.totalorder 2, %s12
      // Predicated region
      $region41: #{tpu_custom_call.1} parent=5 // pred_check
        %p1120 = pneg %p1119
      $region42: #{tpu_custom_call.1} parent=5 // pred_check_branch
        %1122 = sbr.rel (%p1120) target = $region44
      $region43: #{tpu_custom_call.1} parent=5 // pred_region
        %s1123 = ssub.s32 %s12, 2
        // Predicated region
        $region45: #{tpu_custom_call.1} parent=43 // pred_check
          %p1124 = pneg %p88
        $region46: #{tpu_custom_call.1} parent=43 // pred_check_branch
          %1126 = sbr.rel (%p1124) target = $region48
        $region47: #{tpu_custom_call.1} parent=43 // pred_region
          %s1127 = smul.u32 4, %s18
          %p1128 = scmp.lt.s32.totalorder %s1127, 7
          %s1129 = scalar_select %p1128, %s1127, 7
          %s1130 = smul.addr %s1129, 2
          %s1131 = smul.addr %s1130, 8
          %s1132 = scalar_lea.vmem %s2, %s1131
        $region48: #{tpu_custom_call.1} parent=43 // pred_fallthru
          _
      $region44: #{tpu_custom_call.1} parent=5 // pred_fallthru
        _
    $region6: #{tpu_custom_call.1} parent=1 // loop_footer
      %s16 = sadd.s32 1, %s12
    $region7: #{tpu_custom_call.1} parent=1 // loop_footer_branch
      %11 = sbr.rel target = $region3
    $region8: #{tpu_custom_call.1} parent=1 // loop_exit
      _
    %1133 = vsyncpa [#allocation4], 1
    %s1134 = scalar_lea.sflag [#allocation4], 1
    %1135 = vsyncpa %s1134, 1
    %1136 = vsyncpa [#allocation6], 1
    %s1137 = scalar_lea.sflag [#allocation6], 1
    %1138 = vsyncpa %s1137, 1

</llo_original>
